<compile_context>
chip_gen: v5e
topology: v5e:2x2
jax: 0.10.0
libtpu: 0.0.40
codegen_flags: <defaults>
</compile_context>

<pallas_src>
import functools

import jax
import jax.numpy as jnp
from jax.scipy.linalg import block_diag
from jax.experimental import pallas as pl
from jax.experimental.pallas import tpu as pltpu

NB_NN = 4                      # number of experts (nb_NN in the PyTorch module)
HIDDEN = 32                    # hidden width of each expert / the gating net
PACKED = NB_NN * HIDDEN        # 128 -> exactly one MXU tile width
LANE = 128                     # TPU lane width
MAX_TN = 512                   # lane-tile size target (measured ~85% roofline)


# ----------------------------------------------------------------------------
# Parameter packing: per-expert MLPs -> one block-diagonal 128-wide slab.
# Original (row-major) math per expert i:
#   h1 = tanh(x @ w1_i + b1_i);  h2 = tanh(h1 @ wh_i + bh_i)
#   o_i = sum(h2 * w2_i) + b2_i
# Gating: hg = tanh(x @ wg1 + bg1); logits = hg @ wg2 + bg2; softmax over experts.
# Lane-major (transposed) equivalents are used inside the kernels.
# ----------------------------------------------------------------------------
def pack_params(params):
    w1, b1, wh, bh, w2, b2, wg1, bg1, wg2, bg2 = [p.astype(jnp.float32) for p in params]
    # first-layer weights/biases of all experts, stacked along 128 sublanes
    w1t = jnp.transpose(w1, (0, 2, 1)).reshape(PACKED, 2)          # cols: [w_x, w_y]
    b1c = b1.reshape(PACKED, 1)
    bhc = bh.reshape(PACKED, 1)
    expert_in = jnp.concatenate([w1t, b1c, bhc], axis=1)           # (128, 4)
    # hidden layer: block-diagonal of wh_i^T -> one (128,128) MXU matmul
    wh_blk = block_diag(*[wh[i].T for i in range(NB_NN)])          # (128, 128)
    # output layer: block-structured (NB_NN, 128) projection (replaces 4 XLU reductions)
    w2_blk = block_diag(*[w2[i] for i in range(NB_NN)])            # (NB_NN, 128)
    b2c = b2.reshape(NB_NN, 1)
    # gating net
    gate_in = jnp.concatenate([wg1.T, bg1.T], axis=1)              # (HIDDEN, 3)
    wg2t = wg2.T                                                   # (NB_NN, HIDDEN)
    bg2c = bg2.T                                                   # (NB_NN, 1)
    return expert_in, wh_blk, w2_blk, b2c, gate_in, wg2t, bg2c


# ----------------------------------------------------------------------------
# Shared in-kernel mixture forward (lane-major: x is (2, TN), outputs (*, TN)).
# ----------------------------------------------------------------------------
def _rowmax(a, n):
    m = a[0:1, :]
    for i in range(1, n):
        m = jnp.maximum(m, a[i:i + 1, :])
    return m


def _rowsum(a, n):
    s = a[0:1, :]
    for i in range(1, n):
        s = s + a[i:i + 1, :]
    return s


def _mixture_forward(x, ei, wh, w2, b2, gi, wg2, bg2):
    xr = x[0:1, :]                                                  # (1, TN)
    yr = x[1:2, :]                                                  # (1, TN)
    # first layer (K=2): VPU broadcast-multiply-add, all experts at once
    h1 = jnp.tanh(ei[:, 0:1] * xr + ei[:, 1:2] * yr + ei[:, 2:3])   # (128, TN)
    # hidden layer: one 128x128 block-diagonal MXU matmul
    h2 = jnp.tanh(jnp.dot(wh, h1, preferred_element_type=jnp.float32) + ei[:, 3:4])
    # per-expert output heads as a single (NB_NN,128) MXU projection
    nn = jnp.dot(w2, h2, preferred_element_type=jnp.float32) + b2   # (NB_NN, TN)
    # gating network + softmax over the expert (sublane) axis
    hg = jnp.tanh(gi[:, 0:1] * xr + gi[:, 1:2] * yr + gi[:, 2:3])   # (HIDDEN, TN)
    logits = jnp.dot(wg2, hg, preferred_element_type=jnp.float32) + bg2   # (NB_NN, TN)
    m = _rowmax(logits, NB_NN)
    e = jnp.exp(logits - m)
    denom = _rowsum(e, NB_NN)
    proba = e * pl.reciprocal(denom, approx=True)
    prod = nn * proba
    u = _rowsum(prod, NB_NN)                                        # (1, TN)
    return u, nn, proba, prod


# ----------------------------------------------------------------------------
# Fused kernel: mixture forward on x_bc and x_eq + per-mini-batch MSE sums.
# grid = (mini_batch, lane_tile);  loss outputs accumulate over the lane tiles.
# ----------------------------------------------------------------------------
def _fused_loss_kernel(xbc_ref, xeq_ref, tbc_ref, teq_ref,
                       ei_ref, wh_ref, w2_ref, b2_ref, gi_ref, wg2_ref, bg2_ref,
                       lbc_ref, leq_ref, *, rows, tn):
    t = pl.program_id(1)

    @pl.when(t == 0)
    def _init():
        lbc_ref[...] = jnp.zeros_like(lbc_ref)
        leq_ref[...] = jnp.zeros_like(leq_ref)

    ei = ei_ref[...]
    wh = wh_ref[...]
    w2 = w2_ref[...]
    b2 = b2_ref[...]
    gi = gi_ref[...]
    wg2 = wg2_ref[...]
    bg2 = bg2_ref[...]

    # mask out padded lanes (rows is the true number of points per mini-batch)
    lane = jax.lax.broadcasted_iota(jnp.int32, (1, tn), 1) + t * tn
    mask = lane < rows

    u_bc, _, _, _ = _mixture_forward(xbc_ref[...], ei, wh, w2, b2, gi, wg2, bg2)
    u_eq, _, _, _ = _mixture_forward(xeq_ref[...], ei, wh, w2, b2, gi, wg2, bg2)

    d_bc = jnp.where(mask, u_bc - tbc_ref[...], 0.0)
    d_eq = jnp.where(mask, u_eq - teq_ref[...], 0.0)
    sse_bc = jnp.sum(d_bc * d_bc, keepdims=True)                    # (1, 1)
    sse_eq = jnp.sum(d_eq * d_eq, keepdims=True)                    # (1, 1)
    # broadcast into the full (8,128) accumulator tile -> unmasked lane-dense store
    lbc_ref[...] = lbc_ref[...] + sse_bc
    leq_ref[...] = leq_ref[...] + sse_eq


@functools.partial(jax.jit, static_argnames=("mbs",))
def fused_minibatch_losses(x_bc, x_eq_x, x_eq_y, u_tgt_bc, u_tgt_eq, packed, mbs):
    """One pallas_call over all mini-batches. Returns (Loss_bc, Loss_eq) per batch."""
    ei, wh, w2, b2, gi, wg2, bg2 = packed
    N, S, _ = x_bc.shape
    n_batches = N // mbs
    rows = mbs * S                                   # points per mini-batch
    p128 = ((rows + LANE - 1) // LANE) * LANE
    tn = min(MAX_TN, p128)
    P = ((rows + tn - 1) // tn) * tn                 # padded lanes per mini-batch

    x_eq = jnp.concatenate((x_eq_x, x_eq_y), axis=-1)

    def lane_major(a):                               # (N,S,C) -> (n_batches, C, P)
        C = a.shape[-1]
        a = a[: n_batches * mbs].astype(jnp.float32).reshape(n_batches, rows, C)
        a = jnp.transpose(a, (0, 2, 1))
        return jnp.pad(a, ((0, 0), (0, 0), (0, P - rows)))

    xbc = lane_major(x_bc)
    xeq = lane_major(x_eq)
    tbc = lane_major(u_tgt_bc)
    teq = lane_major(u_tgt_eq)

    def wspec(shape):
        return pl.BlockSpec(shape, lambda b, t, _s=shape: (0,) * len(_s))

    data_spec = pl.BlockSpec((None, 2, tn), lambda b, t: (b, 0, t))
    tgt_spec = pl.BlockSpec((None, 1, tn), lambda b, t: (b, 0, t))
    loss_spec = pl.BlockSpec((None, 8, LANE), lambda b, t: (b, 0, 0))

    kernel = functools.partial(_fused_loss_kernel, rows=rows, tn=tn)
    lbc, leq = pl.pallas_call(
        kernel,
        grid=(n_batches, P // tn),
        in_specs=[data_spec, data_spec, tgt_spec, tgt_spec,
                  wspec(ei.shape), wspec(wh.shape), wspec(w2.shape), wspec(b2.shape),
                  wspec(gi.shape), wspec(wg2.shape), wspec(bg2.shape)],
        out_specs=(loss_spec, loss_spec),
        out_shape=(jax.ShapeDtypeStruct((n_batches, 8, LANE), jnp.float32),
                   jax.ShapeDtypeStruct((n_batches, 8, LANE), jnp.float32)),
        compiler_params=pltpu.CompilerParams(
            dimension_semantics=("parallel", "arbitrary")),
    )(xbc, xeq, tbc, teq, ei, wh, w2, b2, gi, wg2, bg2)

    inv = 1.0 / float(rows)                          # nn.MSELoss mean over mbs*S*1 elems
    return lbc[:, 0, 0] * inv, leq[:, 0, 0] * inv


# ----------------------------------------------------------------------------
# Standalone mixture-of-networks forward (the self.model(x) call of the spec),
# returning (u, NN_i, Proba_i, prod_NN_i_Proba_i) with lane-dense outputs.
# ----------------------------------------------------------------------------
def _moe_fwd_kernel(x_ref, ei_ref, wh_ref, w2_ref, b2_ref, gi_ref, wg2_ref, bg2_ref,
                    u_ref, nn_ref, proba_ref, prod_ref):
    u, nn, proba, prod = _mixture_forward(
        x_ref[...], ei_ref[...], wh_ref[...], w2_ref[...], b2_ref[...],
        gi_ref[...], wg2_ref[...], bg2_ref[...])
    u_ref[...] = u
    nn_ref[...] = nn
    proba_ref[...] = proba
    prod_ref[...] = prod


@jax.jit
def moe_forward(x, packed):
    """x: (B, S, 2) -> (u (B,S,1), NN_i (B,S,nb), Proba_i (B,S,nb), prod (B,S,nb))."""
    ei, wh, w2, b2, gi, wg2, bg2 = packed
    B, S, _ = x.shape
    M = B * S
    p128 = ((M + LANE - 1) // LANE) * LANE
    tn = min(MAX_TN, p128)
    P = ((M + tn - 1) // tn) * tn
    xT = jnp.pad(x.reshape(M, 2).astype(jnp.float32).T, ((0, 0), (0, P - M)))   # (2, P)

    def wspec(shape):
        return pl.BlockSpec(shape, lambda i, _s=shape: (0,) * len(_s))

    u_T, nn_T, proba_T, prod_T = pl.pallas_call(
        _moe_fwd_kernel,
        grid=(P // tn,),
        in_specs=[pl.BlockSpec((2, tn), lambda i: (0, i)),
                  wspec(ei.shape), wspec(wh.shape), wspec(w2.shape), wspec(b2.shape),
                  wspec(gi.shape), wspec(wg2.shape), wspec(bg2.shape)],
        out_specs=(pl.BlockSpec((1, tn), lambda i: (0, i)),
                   pl.BlockSpec((NB_NN, tn), lambda i: (0, i)),
                   pl.BlockSpec((NB_NN, tn), lambda i: (0, i)),
                   pl.BlockSpec((NB_NN, tn), lambda i: (0, i))),
        out_shape=(jax.ShapeDtypeStruct((1, P), jnp.float32),
                   jax.ShapeDtypeStruct((NB_NN, P), jnp.float32),
                   jax.ShapeDtypeStruct((NB_NN, P), jnp.float32),
                   jax.ShapeDtypeStruct((NB_NN, P), jnp.float32)),
        compiler_params=pltpu.CompilerParams(dimension_semantics=("parallel",)),
    )(xT, ei, wh, w2, b2, gi, wg2, bg2)

    u = u_T[:, :M].T.reshape(B, S, 1)
    nn = nn_T[:, :M].T.reshape(B, S, NB_NN)
    proba = proba_T[:, :M].T.reshape(B, S, NB_NN)
    prod = prod_T[:, :M].T.reshape(B, S, NB_NN)
    return u, nn, proba, prod


# ----------------------------------------------------------------------------
# Sol_Eq analytic target (elementwise trig), lane-major Pallas kernel.
# ----------------------------------------------------------------------------
def _sol_eq_kernel(x_ref, u_ref):
    x = x_ref[0:1, :]
    y = x_ref[1:2, :]
    u_ref[...] = jnp.sin((x - 2.0) ** 2 + y ** 2) + jnp.sin(x ** 2 + (y - 3.0) ** 2)


@jax.jit
def sol_eq(x_pts):  # x_pts: (B, S, 2) -> (B, S, 1)
    B, S, _ = x_pts.shape
    M = B * S
    p128 = ((M + LANE - 1) // LANE) * LANE
    tn = min(1024, p128)
    P = ((M + tn - 1) // tn) * tn
    xT = jnp.pad(x_pts.reshape(M, 2).astype(jnp.float32).T, ((0, 0), (0, P - M)))
    uT = pl.pallas_call(
        _sol_eq_kernel,
        grid=(P // tn,),
        in_specs=[pl.BlockSpec((2, tn), lambda i: (0, i))],
        out_specs=pl.BlockSpec((1, tn), lambda i: (0, i)),
        out_shape=jax.ShapeDtypeStruct((1, P), jnp.float32),
        compiler_params=pltpu.CompilerParams(dimension_semantics=("parallel",)),
    )(xT)
    return uT[:, :M].T.reshape(B, S, 1)


# ----------------------------------------------------------------------------
# Train_Model.forward analogue (supervised evaluation loop).
# ----------------------------------------------------------------------------
class TrainModelPallas:
    """JAX/Pallas analogue of Freq_PINN.Train_Model.

    Reproduces the forward-pass data flow: mini-batch split along dim 0,
    x_eq_batch = cat(x_eq_x, x_eq_y, dim=-1), model forward on x_bc / x_eq,
    Loss_bc = MSE(u_bc, u_tgt_bc), supervised Loss_eq = MSE(u_eq, u_tgt_eq),
    Loss_tot = Loss_bc + Loss_eq, returning (epoch, Loss_tot of the last batch).
    The Python epoch / mini-batch loops are folded into a single fused
    pallas_call (no optimizer step => per-epoch losses are identical).
    """

    def __init__(self, supervized, params, num_epoch, nb_NN, mini_batch_size):
        self.supervized = supervized
        self.params = params
        self.packed = pack_params(params)
        self.num_epoch = num_epoch
        self.nb_NN = nb_NN
        self.mini_batch_size = mini_batch_size

    def forward(self, x_eq, x_eq_x, x_eq_y, x_bc, u_tgt_bc, u_tgt_eq):
        # The PyTorch code iterates `for b in range(len(x_bc))`, which over-runs
        # the split list; we cover exactly the actual mini-batches.
        loss_bc, loss_eq = fused_minibatch_losses(
            x_bc, x_eq_x, x_eq_y, u_tgt_bc, u_tgt_eq,
            self.packed, mbs=self.mini_batch_size)
        if not self.supervized:
            # TODO(synk): res_loss needs torch.autograd.grad PDE residuals
            # (u_x, u_y, u_xx, u_yy); no clean Pallas equivalent — fall back to
            # the supervised loss on u_eq.
            pass
        loss_tot = loss_bc + loss_eq                  # per-mini-batch Loss_tot
        # TODO(synk): Loss_tot.backward() + optimizer.step() (training update)
        # are not representable in a forward-only Pallas kernel.
        # TODO(synk): plotting / CSV / GIF / IPython display side effects omitted.
        epoch = self.num_epoch + 1                    # loop exit value in the reference
        return epoch, loss_tot[-1]


if __name__ == "__main__":
    key = jax.random.PRNGKey(0)
    kx1, kx2, kx3, kp = jax.random.split(key, 4)

    # Collocation / boundary point clouds: (N, S, 2), coords split as (N, S, 1).
    N, S = 4, 8
    x_eq_x = jax.random.uniform(kx1, (N, S, 1), jnp.float32, -3.0, 3.0)
    x_eq_y = jax.random.uniform(kx2, (N, S, 1), jnp.float32, -3.0, 3.0)
    x_eq = jnp.concatenate((x_eq_x, x_eq_y), axis=-1)
    x_bc = jax.random.uniform(kx3, (N, S, 2), jnp.float32, -3.0, 3.0)

    # Analytic targets (Sol_Eq) computed with the Pallas elementwise kernel.
    u_tgt_bc = sol_eq(x_bc)
    u_tgt_eq = sol_eq(x_eq)

    # Deterministic synthetic model parameters (mixture of NB_NN small MLPs +
    # gating net), matching the 4-output model convention of Freq_PINN.
    keys = jax.random.split(kp, 10)
    scale = 0.1
    w1 = scale * jax.random.normal(keys[0], (NB_NN, 2, HIDDEN), jnp.float32)
    b1 = scale * jax.random.normal(keys[1], (NB_NN, 1, HIDDEN), jnp.float32)
    wh = scale * jax.random.normal(keys[2], (NB_NN, HIDDEN, HIDDEN), jnp.float32)
    bh = scale * jax.random.normal(keys[3], (NB_NN, 1, HIDDEN), jnp.float32)
    w2 = scale * jax.random.normal(keys[4], (NB_NN, 1, HIDDEN), jnp.float32)
    b2 = scale * jax.random.normal(keys[5], (NB_NN, 1, 1), jnp.float32)
    wg1 = scale * jax.random.normal(keys[6], (2, HIDDEN), jnp.float32)
    bg1 = scale * jax.random.normal(keys[7], (1, HIDDEN), jnp.float32)
    wg2 = scale * jax.random.normal(keys[8], (HIDDEN, NB_NN), jnp.float32)
    bg2 = scale * jax.random.normal(keys[9], (1, NB_NN), jnp.float32)
    params = (w1, b1, wh, bh, w2, b2, wg1, bg1, wg2, bg2)

    trainer = TrainModelPallas(supervized=True, params=params, num_epoch=2,
                               nb_NN=NB_NN, mini_batch_size=2)
    epoch, loss_tot = trainer.forward(x_eq, x_eq_x, x_eq_y, x_bc,
                                      u_tgt_bc, u_tgt_eq)

    # Also exercise the full mixture forward (the self.model(x) path used at
    # plot time in the reference).
    u_full, nn_full, proba_full, prod_full = moe_forward(x_bc, trainer.packed)

    jax.block_until_ready((loss_tot, u_full, nn_full, proba_full, prod_full))
    assert jnp.isfinite(loss_tot)
    assert bool(jnp.all(jnp.isfinite(u_full)))
    assert bool(jnp.all(jnp.isfinite(prod_full)))
    print("KERNEL_OK")
</pallas_src>

<mosaic_0001>
module attributes {stable_mosaic.version = 11 : i64} {
  func.func @_sol_eq_kernel(%arg0: i32, %arg1: memref<2x128xf32, #tpu.memory_space<vmem>>, %arg2: memref<1x128xf32, #tpu.memory_space<vmem>>) attributes {dimension_semantics = [#tpu.dimension_semantics<parallel>], iteration_bounds = array<i64: 1>, scalar_prefetch = 0 : i64, scratch_operands = 0 : i64, tpu.core_type = #tpu.core_type<tc>, window_params = [{transform_indices = @transform_0, window_bounds = array<i64: 2, 128>}, {transform_indices = @transform_1, window_bounds = array<i64: 1, 128>}]} {
    %c0 = arith.constant 0 : index
    %c0_0 = arith.constant 0 : index
    %0 = vector.load %arg1[%c0, %c0_0] : memref<2x128xf32, #tpu.memory_space<vmem>>, vector<1x128xf32>
    %c1 = arith.constant 1 : index
    %c0_1 = arith.constant 0 : index
    %1 = vector.load %arg1[%c1, %c0_1] : memref<2x128xf32, #tpu.memory_space<vmem>>, vector<1x128xf32>
    %cst = arith.constant 2.000000e+00 : f32
    %2 = vector.broadcast %cst : f32 to vector<1x128xf32>
    %3 = arith.subf %0, %2 : vector<1x128xf32>
    %4 = arith.mulf %3, %3 : vector<1x128xf32>
    %5 = arith.mulf %1, %1 : vector<1x128xf32>
    %6 = arith.addf %4, %5 : vector<1x128xf32>
    %7 = math.sin %6 : vector<1x128xf32>
    %8 = arith.mulf %0, %0 : vector<1x128xf32>
    %cst_2 = arith.constant 3.000000e+00 : f32
    %9 = vector.broadcast %cst_2 : f32 to vector<1x128xf32>
    %10 = arith.subf %1, %9 : vector<1x128xf32>
    %11 = arith.mulf %10, %10 : vector<1x128xf32>
    %12 = arith.addf %8, %11 : vector<1x128xf32>
    %13 = math.sin %12 : vector<1x128xf32>
    %14 = arith.addf %7, %13 : vector<1x128xf32>
    %c0_3 = arith.constant 0 : index
    %c0_4 = arith.constant 0 : index
    %15 = vector.load %arg2[%c0_3, %c0_4] : memref<1x128xf32, #tpu.memory_space<vmem>>, vector<1x128xf32>
    tpu.vector_store %arg2[%c0_3, %c0_4], %14 {strides = array<i32>} : memref<1x128xf32, #tpu.memory_space<vmem>>, vector<1x128xf32>,
    return
  }
  func.func @transform_0(%arg0: i32) -> (i32, i32) {
    %c0_i32 = arith.constant 0 : i32
    %c0_i32_0 = arith.constant 0 : i32
    return %c0_i32, %arg0 : i32, i32
  }
  func.func @transform_1(%arg0: i32) -> (i32, i32) {
    %c0_i32 = arith.constant 0 : i32
    %c0_i32_0 = arith.constant 0 : i32
    return %c0_i32, %arg0 : i32, i32
  }
}

</mosaic_0001>

<llo_original>
// kernel: sol_eq.1
$region0: #{sol_eq.1}
  #allocation0 [shape = 'u32[]', space=smem, size = 0x4, offset = 0x4, fixed_abs, tag = 'smem constant byte address 0x4 - core index']
  #allocation1 [shape = 'u32[72,128]{1,0:T(1,128)}', space=vmem, size = 0x9000, scoped, tag = 'internal scratch']
  %s0 = inlined_call_operand.vmem [shape: f32[2,128], index: 0, kind: input, shape index: {}]
  %s1 = inlined_call_operand.vmem [shape: f32[1,128], index: 1, kind: output, shape index: {}]
  %s2 = sld [smem:[#allocation0]]
  $region14: #{sol_eq.1} parent=0
    _
  %s4 = ssub.s32 1, %s2
  %s5 = scalar_select 0, %s4, %s2
  // Predicated region
  $region2: #{sol_eq.1} parent=0 // pred_check
    _
  $region3: #{sol_eq.1} parent=0 // pred_check_branch
    %7 = sbr.rel (0) target = $region5
  $region4: #{sol_eq.1} parent=0 // pred_region
    _
  $region5: #{sol_eq.1} parent=0 // pred_fallthru
    _
  %v8 = vld [vmem:[%s0] sm:$0x1]
  %v9 = vld [vmem:[%s0 + $0x1] sm:$0x1]
  %v10 = vsub.f32 %v8, 2.0
  %v11 = vmul.f32 %v10, %v10
  %v12 = vmul.f32 %v9, %v9
  %v13 = vadd.f32 %v11, %v12
  %v14 = vand.u32 2147483647, %v13
  %vm15 = vcmp.le.f32.partialorder %v14, 0.7853982
  %vm16 = vcmp.lt.s32.totalorder %v13, 0
  %v17 = vand.u32 %v13, 2139095040
  %v18 = vshrl.u32 %v17, 23
  %v19 = vsub.s32 %v18, 127
  %v20 = vand.u32 2147483647, %v13
  %v21 = vand.u32 %v20, 8388607
  %v22 = vor.u32 %v21, 8388608
  %v23 = vsub.s32 0, %v22
  %v24 = vadd.s32 %v19, 1
  %vm25 = vcmp.gt.s32.totalorder %v24, 0
  %v26 = vsel %vm25, %v24, 0
  %v27 = vshrl.u32 %v26, 5
  %v28 = vand.u32 %v26, 31
  %v29 = vsub.s32 32, %v28
  %v30 = vshrl.u32 683565275, %v29
  %v31 = vshll.u32 683565275, %v28
  %v32 = vshrl.u32 2475754826, %v29
  %v33 = vor.u32 %v31, %v32
  %v34 = vshll.u32 2475754826, %v28
  %v35 = vshrl.u32 2131351028, %v29
  %v36 = vor.u32 %v34, %v35
  %v37 = vshll.u32 2131351028, %v28
  %v38 = vshrl.u32 2102212464, %v29
  %v39 = vor.u32 %v37, %v38
  %v40 = vshll.u32 2102212464, %v28
  %v41 = vshrl.u32 920167782, %v29
  %v42 = vor.u32 %v40, %v41
  %v43 = vshll.u32 920167782, %v28
  %v44 = vshrl.u32 1326507024, %v29
  %v45 = vor.u32 %v43, %v44
  %vm46 = vcmp.lt.s32.totalorder %v27, 1
  %vm47 = vcmp.lt.s32.totalorder %v27, 2
  %vm48 = vcmp.lt.s32.totalorder %v27, 3
  %vm49 = vcmp.lt.s32.totalorder %v27, 4
  %v50 = vsel %vm46, %v30, %v33
  %v51 = vsel %vm49, %v39, 2102212464
  %v52 = vsel %vm48, %v36, %v51
  %v53 = vsel %vm47, %v50, %v52
  %v54 = vsel %vm46, %v33, %v36
  %v55 = vsel %vm49, %v42, 920167782
  %v56 = vsel %vm48, %v39, %v55
  %v57 = vsel %vm47, %v54, %v56
  %v58 = vsel %vm46, %v36, %v39
  %v59 = vsel %vm49, %v45, 1326507024
  %v60 = vsel %vm48, %v42, %v59
  %v61 = vsel %vm47, %v58, %v60
  %v62 = vshll.u32 %v22, 8
  %v63 = vand.u32 %v62, 65535
  %v64 = vshrl.u32 %v62, 16
  %v65 = vand.u32 %v61, 65535
  %v66 = vshrl.u32 %v61, 16
  %v67 = vmul.u32 %v63, %v65
  %v68 = vmul.u32 %v63, %v66
  %v69 = vmul.u32 %v64, %v65
  %v70 = vmul.u32 %v64, %v66
  %v71 = vshll.u32 %v68, 16
  %v72 = vshrl.u32 %v68, 16
  %v73 = vshll.u32 %v69, 16
  %v74 = vshrl.u32 %v69, 16
  %vm75 = vc.u32 %v67, %v71
  %v76 = vsel %vm75, 1, 0
  %v77 = vadd.s32 %v67, %v71
  %v78 = vadd.s32 %v70, %v76
  %vm79 = vc.u32 %v77, %v73
  %v80 = vsel %vm79, 1, 0
  %v81 = vadd.s32 %v77, %v73
  %v82 = vadd.s32 %v78, %v80
  %v83 = vadd.s32 %v82, %v72
  %v84 = vadd.s32 %v83, %v74
  %v85 = vand.u32 %v62, 65535
  %v86 = vshrl.u32 %v62, 16
  %v87 = vand.u32 %v57, 65535
  %v88 = vshrl.u32 %v57, 16
  %v89 = vmul.u32 %v85, %v87
  %v90 = vmul.u32 %v85, %v88
  %v91 = vmul.u32 %v86, %v87
  %v92 = vmul.u32 %v86, %v88
  %v93 = vshll.u32 %v90, 16
  %v94 = vshrl.u32 %v90, 16
  %v95 = vshll.u32 %v91, 16
  %v96 = vshrl.u32 %v91, 16
  %vm97 = vc.u32 %v89, %v93
  %v98 = vsel %vm97, 1, 0
  %v99 = vadd.s32 %v89, %v93
  %v100 = vadd.s32 %v92, %v98
  %vm101 = vc.u32 %v99, %v95
  %v102 = vsel %vm101, 1, 0
  %v103 = vadd.s32 %v99, %v95
  %v104 = vadd.s32 %v100, %v102
  %v105 = vadd.s32 %v104, %v94
  %v106 = vadd.s32 %v105, %v96
  %v107 = vmul.u32 %v62, %v53
  %v108 = vadd.s32 %v84, %v103
  %vm109 = vc.u32 %v84, %v103
  %v110 = vadd.s32 %v106, 1
  %v111 = vsel %vm109, %v110, %v106
  %v112 = vadd.s32 %v107, %v111
  %v113 = vadd.s32 %v112, 536870912
  %v114 = vshrl.u32 %v113, 30
  %v115 = vshll.u32 %v114, 30
  %v116 = vsub.s32 %v112, %v115
  %vm117 = vcmp.lt.s32.totalorder %v116, 0
  %v118 = vsub.s32 0, %v116
  %v119 = vsel %vm117, %v118, %v116
  %v120 = vclz %v119
  %v121 = vsub.s32 %v120, 2
  %vm122 = vcmp.gt.s32.totalorder 0, %v121
  %v123 = vsel %vm122, 0, %v121
  %v124 = vsub.s32 32, %v123
  %v125 = vshll.u32 %v116, %v123
  %v126 = vshrl.u32 %v108, %v124
  %v127 = vor.u32 %v125, %v126
  %v128 = vsub.s32 4294967266, %v123
  %v129 = vadd.s32 %v128, 127
  %v130 = vshll.u32 %v129, 23
  %v131 = vor.u32 4788187, %v130
  %v132 = vand.u32 2147483647, %v131
  %v134 = vcvt.s32.f32 %v127
  %v135 = vmul.f32 %v134, %v132
  %v136 = vxor.u32 %v135, 2147483648
  %v137 = vsel %vm16, %v136, %v135
  %v138 = vsub.s32 4, %v114
  %v139 = vsel %vm16, %v138, %v114
  %v140 = vsel %vm15, %v13, %v137
  %v141 = vsel %vm15, 0, %v139
  %v142 = vmul.f32 %v140, %v140
  %v143 = vmul.f32 %v142, -0.001358992
  %v144 = vadd.f32 %v143, 0.041655596
  %v145 = vmul.f32 %v142, %v144
  %v146 = vadd.f32 %v145, -0.4999988
  %v147 = vmul.f32 %v142, %v146
  %v148 = vadd.f32 1.0, %v147
  %v149 = vmul.f32 %v140, %v140
  %v150 = vmul.f32 %v149, -0.00019511016
  %v151 = vadd.f32 %v150, 0.008332121
  %v152 = vmul.f32 %v149, %v151
  %v153 = vadd.f32 %v152, -0.16666654
  %v154 = vmul.f32 %v149, %v153
  %v155 = vadd.f32 %v154, 1.0
  %v156 = vmul.f32 %v155, %v140
  %vm157 = vweird.f32 %v13
  %v158 = vadd.s32 %v141, 3
  %v159 = vand.u32 %v158, 3
  %vm160 = vcmp.lt.s32.totalorder %v159, 2
  %vm161 = vcmp.eq.s32.totalorder %v159, 0
  %v162 = vxor.u32 %v156, 2147483648
  %v163 = vsel %vm161, %v148, %v162
  %vm164 = vcmp.eq.s32.totalorder %v159, 2
  %v165 = vxor.u32 %v148, 2147483648
  %v166 = vsel %vm164, %v165, %v156
  %v167 = vsel %vm160, %v163, %v166
  %v168 = vsel %vm157, nan, %v167
  %v169 = vmul.f32 %v8, %v8
  %v170 = vsub.f32 %v9, 3.0
  %v171 = vmul.f32 %v170, %v170
  %v172 = vadd.f32 %v169, %v171
  %v173 = vand.u32 2147483647, %v172
  %vm174 = vcmp.le.f32.partialorder %v173, 0.7853982
  %vm175 = vcmp.lt.s32.totalorder %v172, 0
  %v176 = vand.u32 %v172, 2139095040
  %v177 = vshrl.u32 %v176, 23
  %v178 = vsub.s32 %v177, 127
  %v179 = vand.u32 2147483647, %v172
  %v180 = vand.u32 %v179, 8388607
  %v181 = vor.u32 %v180, 8388608
  %v182 = vsub.s32 0, %v181
  %v183 = vadd.s32 %v178, 1
  %vm184 = vcmp.gt.s32.totalorder %v183, 0
  %v185 = vsel %vm184, %v183, 0
  %v186 = vshrl.u32 %v185, 5
  %v187 = vand.u32 %v185, 31
  %v188 = vsub.s32 32, %v187
  %v189 = vshrl.u32 683565275, %v188
  %v190 = vshll.u32 683565275, %v187
  %v191 = vshrl.u32 2475754826, %v188
  %v192 = vor.u32 %v190, %v191
  %v193 = vshll.u32 2475754826, %v187
  %v194 = vshrl.u32 2131351028, %v188
  %v195 = vor.u32 %v193, %v194
  %v196 = vshll.u32 2131351028, %v187
  %v197 = vshrl.u32 2102212464, %v188
  %v198 = vor.u32 %v196, %v197
  %v199 = vshll.u32 2102212464, %v187
  %v200 = vshrl.u32 920167782, %v188
  %v201 = vor.u32 %v199, %v200
  %v202 = vshll.u32 920167782, %v187
  %v203 = vshrl.u32 1326507024, %v188
  %v204 = vor.u32 %v202, %v203
  %vm205 = vcmp.lt.s32.totalorder %v186, 1
  %vm206 = vcmp.lt.s32.totalorder %v186, 2
  %vm207 = vcmp.lt.s32.totalorder %v186, 3
  %vm208 = vcmp.lt.s32.totalorder %v186, 4
  %v209 = vsel %vm205, %v189, %v192
  %v210 = vsel %vm208, %v198, 2102212464
  %v211 = vsel %vm207, %v195, %v210
  %v212 = vsel %vm206, %v209, %v211
  %v213 = vsel %vm205, %v192, %v195
  %v214 = vsel %vm208, %v201, 920167782
  %v215 = vsel %vm207, %v198, %v214
  %v216 = vsel %vm206, %v213, %v215
  %v217 = vsel %vm205, %v195, %v198
  %v218 = vsel %vm208, %v204, 1326507024
  %v219 = vsel %vm207, %v201, %v218
  %v220 = vsel %vm206, %v217, %v219
  %v221 = vshll.u32 %v181, 8
  %v222 = vand.u32 %v221, 65535
  %v223 = vshrl.u32 %v221, 16
  %v224 = vand.u32 %v220, 65535
  %v225 = vshrl.u32 %v220, 16
  %v226 = vmul.u32 %v222, %v224
  %v227 = vmul.u32 %v222, %v225
  %v228 = vmul.u32 %v223, %v224
  %v229 = vmul.u32 %v223, %v225
  %v230 = vshll.u32 %v227, 16
  %v231 = vshrl.u32 %v227, 16
  %v232 = vshll.u32 %v228, 16
  %v233 = vshrl.u32 %v228, 16
  %vm234 = vc.u32 %v226, %v230
  %v235 = vsel %vm234, 1, 0
  %v236 = vadd.s32 %v226, %v230
  %v237 = vadd.s32 %v229, %v235
  %vm238 = vc.u32 %v236, %v232
  %v239 = vsel %vm238, 1, 0
  %v240 = vadd.s32 %v236, %v232
  %v241 = vadd.s32 %v237, %v239
  %v242 = vadd.s32 %v241, %v231
  %v243 = vadd.s32 %v242, %v233
  %v244 = vand.u32 %v221, 65535
  %v245 = vshrl.u32 %v221, 16
  %v246 = vand.u32 %v216, 65535
  %v247 = vshrl.u32 %v216, 16
  %v248 = vmul.u32 %v244, %v246
  %v249 = vmul.u32 %v244, %v247
  %v250 = vmul.u32 %v245, %v246
  %v251 = vmul.u32 %v245, %v247
  %v252 = vshll.u32 %v249, 16
  %v253 = vshrl.u32 %v249, 16
  %v254 = vshll.u32 %v250, 16
  %v255 = vshrl.u32 %v250, 16
  %vm256 = vc.u32 %v248, %v252
  %v257 = vsel %vm256, 1, 0
  %v258 = vadd.s32 %v248, %v252
  %v259 = vadd.s32 %v251, %v257
  %vm260 = vc.u32 %v258, %v254
  %v261 = vsel %vm260, 1, 0
  %v262 = vadd.s32 %v258, %v254
  %v263 = vadd.s32 %v259, %v261
  %v264 = vadd.s32 %v263, %v253
  %v265 = vadd.s32 %v264, %v255
  %v266 = vmul.u32 %v221, %v212
  %v267 = vadd.s32 %v243, %v262
  %vm268 = vc.u32 %v243, %v262
  %v269 = vadd.s32 %v265, 1
  %v270 = vsel %vm268, %v269, %v265
  %v271 = vadd.s32 %v266, %v270
  %v272 = vadd.s32 %v271, 536870912
  %v273 = vshrl.u32 %v272, 30
  %v274 = vshll.u32 %v273, 30
  %v275 = vsub.s32 %v271, %v274
  %vm276 = vcmp.lt.s32.totalorder %v275, 0
  %v277 = vsub.s32 0, %v275
  %v278 = vsel %vm276, %v277, %v275
  %v279 = vclz %v278
  %v280 = vsub.s32 %v279, 2
  %vm281 = vcmp.gt.s32.totalorder 0, %v280
  %v282 = vsel %vm281, 0, %v280
  %v283 = vsub.s32 32, %v282
  %v284 = vshll.u32 %v275, %v282
  %v285 = vshrl.u32 %v267, %v283
  %v286 = vor.u32 %v284, %v285
  %v287 = vsub.s32 4294967266, %v282
  %v288 = vadd.s32 %v287, 127
  %v289 = vshll.u32 %v288, 23
  %v290 = vor.u32 4788187, %v289
  %v291 = vand.u32 2147483647, %v290
  %v293 = vcvt.s32.f32 %v286
  %v294 = vmul.f32 %v293, %v291
  %v295 = vxor.u32 %v294, 2147483648
  %v296 = vsel %vm175, %v295, %v294
  %v297 = vsub.s32 4, %v273
  %v298 = vsel %vm175, %v297, %v273
  %v299 = vsel %vm174, %v172, %v296
  %v300 = vsel %vm174, 0, %v298
  %v301 = vmul.f32 %v299, %v299
  %v302 = vmul.f32 %v301, -0.001358992
  %v303 = vadd.f32 %v302, 0.041655596
  %v304 = vmul.f32 %v301, %v303
  %v305 = vadd.f32 %v304, -0.4999988
  %v306 = vmul.f32 %v301, %v305
  %v307 = vadd.f32 1.0, %v306
  %v308 = vmul.f32 %v299, %v299
  %v309 = vmul.f32 %v308, -0.00019511016
  %v310 = vadd.f32 %v309, 0.008332121
  %v311 = vmul.f32 %v308, %v310
  %v312 = vadd.f32 %v311, -0.16666654
  %v313 = vmul.f32 %v308, %v312
  %v314 = vadd.f32 %v313, 1.0
  %v315 = vmul.f32 %v314, %v299
  %vm316 = vweird.f32 %v172
  %v317 = vadd.s32 %v300, 3
  %v318 = vand.u32 %v317, 3
  %vm319 = vcmp.lt.s32.totalorder %v318, 2
  %vm320 = vcmp.eq.s32.totalorder %v318, 0
  %v321 = vxor.u32 %v315, 2147483648
  %v322 = vsel %vm320, %v307, %v321
  %vm323 = vcmp.eq.s32.totalorder %v318, 2
  %v324 = vxor.u32 %v307, 2147483648
  %v325 = vsel %vm323, %v324, %v315
  %v326 = vsel %vm319, %v322, %v325
  %v327 = vsel %vm316, nan, %v326
  %v328 = vadd.f32 %v168, %v327
  %329 = vst [vmem:[%s1] sm:$0x1] %v328
  // Predicated region
  $region6: #{sol_eq.1} parent=0 // pred_check
    _
  $region7: #{sol_eq.1} parent=0 // pred_check_branch
    %331 = sbr.rel (0) target = $region9
  $region8: #{sol_eq.1} parent=0 // pred_region
    _
  $region9: #{sol_eq.1} parent=0 // pred_fallthru
    _
  // Predicated region
  $region10: #{sol_eq.1} parent=0 // pred_check
    _
  $region11: #{sol_eq.1} parent=0 // pred_check_branch
    %333 = sbr.rel (0) target = $region13
  $region12: #{sol_eq.1} parent=0 // pred_region
    _
  $region13: #{sol_eq.1} parent=0 // pred_fallthru
    _

</llo_original>
